<compile_context>
chip_gen: v7x
topology: tpu7x:2x2x1
jax: 0.10.0
libtpu: 0.0.40
codegen_flags: <defaults>
</compile_context>

<pallas_src>
import functools
import math

import jax
import jax.numpy as jnp
from jax.experimental import pallas as pl
from jax.experimental.pallas import tpu as pltpu


def _round_up(x, m):
    return (x + m - 1) // m * m


# -------------------- Kernel 1: fused reparameterized sampling ----------------

def _sample_kernel(mu_ref, ls_ref, eps_ref, out_ref):
    # w = mu + exp(log_sigma) * eps   (EUP exp + VPU FMA), cast on store.
    out_ref[...] = (mu_ref[...] + jnp.exp(ls_ref[...]) * eps_ref[...]).astype(out_ref.dtype)


def _pallas_sample(mu, ls, eps, out_dtype):
    """Elementwise mu + exp(ls)*eps on [R, C] (C multiple of 128; R==1 or mult of 8).

    Emits the result directly in `out_dtype` (e.g. bf16) so no extra astype pass.
    """
    R, C = mu.shape
    rb = R if R <= 1024 else math.gcd(R, 1024)   # R is 1 or a multiple of 8 here
    spec = pl.BlockSpec((rb, C), lambda i: (i, 0))
    return pl.pallas_call(
        _sample_kernel,
        out_shape=jax.ShapeDtypeStruct((R, C), out_dtype),
        grid=(R // rb,),
        in_specs=[spec, spec, spec],
        out_specs=spec,
        compiler_params=pltpu.CompilerParams(dimension_semantics=("parallel",)),
    )(mu, ls, eps)


# -------------------- Kernel 2: tap-folded direct convolution -----------------

def _direct_conv_kernel(xp_ref, w_ref, b_ref, o_ref, acc_ref, *, kh, kw, oh, ow, cinp):
    # xp_ref : (1, Hp, Wp, Cinp)   spatially padded image, channels last (bf16)
    # w_ref  : (kh*kw*Cinp, tn)    sampled weight slab, tap-major rows (bf16)
    # b_ref  : (1, tn) f32         sampled bias
    # o_ref  : (1, oh*ow, tn)      output block (f32)
    # acc_ref: (oh*ow, tn) f32     VMEM accumulator
    slab = xp_ref[0]          # whole padded image lives in VMEM; taps are slices of it
    wmat = w_ref[...]
    acc_ref[...] = jnp.broadcast_to(b_ref[...], acc_ref.shape)   # bias folded into init
    for t in range(kh * kw):                                     # static, unrolled taps
        i, j = divmod(t, kw)
        a = slab[i:i + oh, j:j + ow, :].reshape(oh * ow, cinp)   # static slice, free reshape
        acc_ref[...] += jnp.dot(a, wmat[t * cinp:(t + 1) * cinp, :],
                                preferred_element_type=jnp.float32)
    o_ref[0] = acc_ref[...].astype(o_ref.dtype)


def _pallas_direct_conv(xp, w_mat, b_row, *, kh, kw, oh, ow, tn, vmem_limit):
    n, hp, wp, cinp = xp.shape
    kk, c_pad = w_mat.shape
    assert kk == kh * kw * cinp and c_pad % tn == 0
    ohw = oh * ow
    kernel = functools.partial(_direct_conv_kernel, kh=kh, kw=kw, oh=oh, ow=ow, cinp=cinp)
    cost = pl.CostEstimate(
        flops=2 * n * ohw * kk * c_pad,
        transcendentals=0,
        bytes_accessed=(n * hp * wp * cinp * xp.dtype.itemsize * (c_pad // tn)
                        + kk * c_pad * w_mat.dtype.itemsize * n
                        + c_pad * 4 + n * ohw * c_pad * 4),
    )
    return pl.pallas_call(
        kernel,
        out_shape=jax.ShapeDtypeStruct((n, ohw, c_pad), jnp.float32),
        grid_spec=pltpu.PrefetchScalarGridSpec(
            num_scalar_prefetch=0,
            grid=(n, c_pad // tn),
            in_specs=[
                pl.BlockSpec((1, hp, wp, cinp), lambda b, c: (b, 0, 0, 0)),  # image slab
                pl.BlockSpec((kk, tn), lambda b, c: (0, c)),                 # weight slab
                pl.BlockSpec((1, tn), lambda b, c: (0, c)),                  # bias
            ],
            out_specs=pl.BlockSpec((1, ohw, tn), lambda b, c: (b, 0, c)),
            scratch_shapes=[pltpu.VMEM((ohw, tn), jnp.float32)],
        ),
        compiler_params=pltpu.CompilerParams(
            dimension_semantics=("parallel", "parallel"),
            vmem_limit_bytes=vmem_limit,
        ),
        cost_estimate=cost,
    )(xp, w_mat, b_row)


# -------------------- Kernel 3: tiled im2col matmul fallback ------------------

def _matmul_bias_kernel(p_ref, w_ref, b_ref, o_ref, acc_ref):
    # grid = (M tiles, Cout tiles, K tiles); K innermost reduction axis.
    k = pl.program_id(2)
    prod = jnp.dot(p_ref[...], w_ref[...], preferred_element_type=jnp.float32)

    @pl.when(k == 0)
    def _():
        acc_ref[...] = prod + b_ref[...]          # direct write; bias folded into init

    @pl.when(k > 0)
    def _():
        acc_ref[...] += prod

    @pl.when(k == pl.num_programs(2) - 1)
    def _():
        o_ref[...] = acc_ref[...].astype(o_ref.dtype)


def _pallas_matmul_bias(patches, w, b, *, tm, tn, tk, vmem_limit):
    """patches [M,K] @ w [K,C] + b [1,C] -> [M,C]; dims pre-padded to tiles."""
    M, K = patches.shape
    Kw, C = w.shape
    assert Kw == K and b.shape == (1, C)
    assert M % tm == 0 and K % tk == 0 and C % tn == 0
    grid = (M // tm, C // tn, K // tk)
    # Count operand re-reads (A re-DMA'd per Cout tile, W per M tile).
    cost = pl.CostEstimate(
        flops=2 * M * K * C,
        transcendentals=0,
        bytes_accessed=(M * K * patches.dtype.itemsize * (C // tn)
                        + K * C * w.dtype.itemsize * (M // tm)
                        + C * 4 + M * C * 4),
    )
    return pl.pallas_call(
        _matmul_bias_kernel,
        out_shape=jax.ShapeDtypeStruct((M, C), jnp.float32),
        grid_spec=pltpu.PrefetchScalarGridSpec(
            num_scalar_prefetch=0,
            grid=grid,
            in_specs=[
                pl.BlockSpec((tm, tk), lambda i, j, k: (i, k)),   # patches tile
                pl.BlockSpec((tk, tn), lambda i, j, k: (k, j)),   # sampled W tile
                pl.BlockSpec((1, tn), lambda i, j, k: (0, j)),    # bias (block idx const in k)
            ],
            out_specs=pl.BlockSpec((tm, tn), lambda i, j, k: (i, j)),
            scratch_shapes=[pltpu.VMEM((tm, tn), jnp.float32)],
        ),
        compiler_params=pltpu.CompilerParams(
            dimension_semantics=("parallel", "parallel", "arbitrary"),
            vmem_limit_bytes=vmem_limit,
        ),
        cost_estimate=cost,
    )(patches, w, b)


# ------------------------------ module wrapper --------------------------------

class BayesConv2dPallas:
    """Bayesian 2-D convolution forward pass on TPU via Pallas kernels."""

    def __init__(self, prior_mu, prior_sigma, in_channels, out_channels,
                 kernel_size, stride=1, padding=0, bias=True, *, key,
                 compute_dtype=jnp.bfloat16,       # bf16 MXU operands, f32 accumulate
                 out_layout="NCHW",                # "NHWC" skips the final transpose
                 tile_m=1024, tile_n=256, tile_k=1024,
                 vmem_limit_bytes=32 * 1024 * 1024,       # v7x-safe; raise on v5e/v6e
                 direct_vmem_budget=20 * 1024 * 1024):
        # TODO(synk): dilation != 1, groups != 1 and padding_mode='circular' are not implemented.
        if isinstance(kernel_size, (tuple, list)):
            kh, kw = kernel_size
        else:
            kh = kw = int(kernel_size)
        self.kernel_size = (kh, kw)
        self.stride = (stride, stride) if isinstance(stride, int) else tuple(stride)
        self.padding = (padding, padding) if isinstance(padding, int) else tuple(padding)
        self.in_channels = in_channels
        self.out_channels = out_channels
        self.use_bias = bias
        self.prior_log_sigma = math.log(prior_sigma)
        self.compute_dtype = compute_dtype
        assert out_layout in ("NCHW", "NHWC")
        self.out_layout = out_layout
        self.tile_m, self.tile_n, self.tile_k = tile_m, tile_n, tile_k
        self.vmem_limit_bytes = vmem_limit_bytes
        self.direct_vmem_budget = direct_vmem_budget

        # reset_parameters(): uniform(-stdv, stdv) for mu, log_sigma = log(prior_sigma)
        n = in_channels * (kh ** 2)
        stdv = 1.0 / math.sqrt(n)
        k_w, k_b = jax.random.split(key)
        wshape = (out_channels, in_channels, kh, kw)
        self.weight_mu = jax.random.uniform(k_w, wshape, jnp.float32, -stdv, stdv)
        self.weight_log_sigma = jnp.full(wshape, self.prior_log_sigma, jnp.float32)
        if bias:
            self.bias_mu = jax.random.uniform(k_b, (out_channels,), jnp.float32, -stdv, stdv)
            self.bias_log_sigma = jnp.full((out_channels,), self.prior_log_sigma, jnp.float32)
        else:
            self.bias_mu = None
            self.bias_log_sigma = None

        # freeze()/unfreeze() buffers (None => fresh eps per forward, as in PyTorch).
        self.weight_eps = None
        self.bias_eps = None

    def freeze(self, key):
        kw_, kb_ = jax.random.split(key)
        self.weight_eps = jax.random.normal(kw_, self.weight_mu.shape, jnp.float32)
        if self.use_bias:
            self.bias_eps = jax.random.normal(kb_, (self.out_channels,), jnp.float32)

    def unfreeze(self):
        self.weight_eps = None
        self.bias_eps = None

    def __call__(self, x, *, key=None):
        kh, kw = self.kernel_size
        sh, sw = self.stride
        ph, pw = self.padding
        Cout, Cin = self.out_channels, self.in_channels
        N, _, H, W = x.shape
        OH = (H + 2 * ph - kh) // sh + 1
        OW = (W + 2 * pw - kw) // sw + 1
        assert OH > 0 and OW > 0

        Cinp = _round_up(Cin, 8)            # sublane-friendly channel pad
        T = kh * kw
        KK = T * Cinp                       # reduction length: tap-major, channel-minor

        # ---- output-channel tiling (shared by both paths) ----
        c128 = _round_up(Cout, 128)
        tn = min(self.tile_n, c128)
        if c128 % tn:
            tn = 128
        C_pad = _round_up(Cout, tn)

        # ---- eps (fresh, or frozen buffers) ----
        if self.weight_eps is None:
            assert key is not None, "unfrozen BayesConv2d needs a PRNG key per forward"
            ke_w, ke_b = jax.random.split(key)
            w_eps = jax.random.normal(ke_w, (Cout, Cin, kh, kw), jnp.float32)
            b_eps = (jax.random.normal(ke_b, (Cout,), jnp.float32)
                     if self.use_bias else jnp.zeros((Cout,), jnp.float32))
        else:
            w_eps = self.weight_eps
            b_eps = (self.bias_eps if (self.use_bias and self.bias_eps is not None)
                     else jnp.zeros((Cout,), jnp.float32))

        # ---- fused sampling: emit weight directly in compute_dtype, pre-laid-out ----
        def to_mat(a):  # [Cout, Cin, kh, kw] -> [KK, C_pad]; row = (i*kw + j)*Cinp + ci
            a = jnp.transpose(a, (2, 3, 1, 0))                   # small O(K*Cout) permute
            a = jnp.pad(a, ((0, 0), (0, 0), (0, Cinp - Cin), (0, C_pad - Cout)))
            return a.reshape(KK, C_pad)

        w_mat = _pallas_sample(to_mat(self.weight_mu), to_mat(self.weight_log_sigma),
                               to_mat(w_eps), self.compute_dtype)

        def to_row(a):
            return jnp.pad(a.reshape(1, Cout), ((0, 0), (0, C_pad - Cout)))

        if self.use_bias:
            b_row = _pallas_sample(to_row(self.bias_mu), to_row(self.bias_log_sigma),
                                   to_row(b_eps), jnp.float32)
        else:
            b_row = jnp.zeros((1, C_pad), jnp.float32)

        # ---- activations: NCHW -> spatially padded, channels-last, compute_dtype ----
        xp = jnp.pad(x, ((0, 0), (0, 0), (ph, ph), (pw, pw)))
        xp = jnp.transpose(xp, (0, 2, 3, 1))          # small: raw input, not im2col-inflated
        xp = jnp.pad(xp, ((0, 0), (0, 0), (0, 0), (0, Cinp - Cin))).astype(self.compute_dtype)
        Hp, Wp = H + 2 * ph, W + 2 * pw

        # ---- path selection: tap-folded direct conv when the slab fits VMEM ----
        itm = jnp.dtype(self.compute_dtype).itemsize
        slab_bytes = (2 * (Hp * Wp * Cinp * itm + KK * tn * itm + OH * OW * tn * 4)
                      + OH * OW * tn * 4)
        use_direct = ((sh, sw) == (1, 1) and OW % 8 == 0
                      and slab_bytes <= self.direct_vmem_budget)
        # TODO(synk): spatially tile the direct path (halo DMA) instead of falling back
        # to im2col for large images / strided convs.

        if use_direct:
            out3 = _pallas_direct_conv(xp, w_mat, b_row, kh=kh, kw=kw, oh=OH, ow=OW,
                                       tn=tn, vmem_limit=self.vmem_limit_bytes)
            out_nhwc = out3[:, :, :Cout].reshape(N, OH, OW, Cout)
        else:
            # Channels-last im2col (no M*K transpose), bf16 patches, tiled MXU matmul.
            cols = []
            for i in range(kh):
                for j in range(kw):
                    cols.append(xp[:, i:i + sh * (OH - 1) + 1:sh,
                                   j:j + sw * (OW - 1) + 1:sw, :])   # [N, OH, OW, Cinp]
            patches = jnp.stack(cols, axis=3).reshape(N * OH * OW, KK)

            M = N * OH * OW
            M128 = _round_up(M, 128)
            tm = min(self.tile_m, M128)
            tk = min(self.tile_k, _round_up(KK, 128))
            # v7x megacore: keep >= 2 blocks on a parallel axis when possible.
            if M128 // tm <= 1 and C_pad // tn <= 1 and M128 >= 256:
                tm = _round_up(M128 // 2, 128)
            M_pad = _round_up(M, tm)
            K_pad = _round_up(KK, tk)

            patches = jnp.pad(patches, ((0, M_pad - M), (0, K_pad - KK)))
            w_k = jnp.pad(w_mat, ((0, K_pad - KK), (0, 0)))
            out_flat = _pallas_matmul_bias(patches, w_k, b_row, tm=tm, tn=tn, tk=tk,
                                           vmem_limit=self.vmem_limit_bytes)
            out_nhwc = out_flat[:M, :Cout].reshape(N, OH, OW, Cout)

        if self.out_layout == "NHWC":
            return out_nhwc
        return out_nhwc.transpose(0, 3, 1, 2)   # NCHW, matching PyTorch


# ------------------------------ demo / self-check -----------------------------

if __name__ == "__main__":
    key = jax.random.PRNGKey(0)
    k_param, k_x, k_fwd = jax.random.split(key, 3)

    N, Cin, H, W = 2, 4, 16, 16
    Cout, ksize, pad = 8, 3, 1
    x = jax.random.normal(k_x, (N, Cin, H, W), jnp.float32)   # NCHW

    def reference(layer, x, fwd_key, stride, padding):
        # Same eps draw as inside __call__, same bf16 MXU operands / f32 accumulate.
        ke_w, ke_b = jax.random.split(fwd_key)
        w_eps = jax.random.normal(ke_w, layer.weight_mu.shape, jnp.float32)
        b_eps = jax.random.normal(ke_b, (layer.out_channels,), jnp.float32)
        w_s = layer.weight_mu + jnp.exp(layer.weight_log_sigma) * w_eps
        b_s = layer.bias_mu + jnp.exp(layer.bias_log_sigma) * b_eps
        out = jax.lax.conv_general_dilated(
            x.astype(jnp.bfloat16), w_s.astype(jnp.bfloat16),
            window_strides=(stride, stride),
            padding=[(padding, padding), (padding, padding)],
            dimension_numbers=("NCHW", "OIHW", "NCHW"),
            preferred_element_type=jnp.float32)
        return out + b_s[None, :, None, None]

    # 1) stride=1 -> tap-folded direct-conv Pallas kernel.
    layer1 = BayesConv2dPallas(prior_mu=0.0, prior_sigma=0.1,
                               in_channels=Cin, out_channels=Cout,
                               kernel_size=ksize, stride=1, padding=pad,
                               bias=True, key=k_param)
    out1 = layer1(x, key=k_fwd)
    jax.block_until_ready(out1)
    ref1 = reference(layer1, x, k_fwd, 1, pad)
    assert out1.shape == (N, Cout, H, W)
    assert jnp.allclose(out1, ref1, atol=1e-2, rtol=1e-2), \
        float(jnp.max(jnp.abs(out1 - ref1)))

    # 2) stride=2 -> tiled im2col matmul fallback path.
    layer2 = BayesConv2dPallas(prior_mu=0.0, prior_sigma=0.1,
                               in_channels=Cin, out_channels=Cout,
                               kernel_size=ksize, stride=2, padding=pad,
                               bias=True, key=k_param)
    out2 = layer2(x, key=k_fwd)
    jax.block_until_ready(out2)
    ref2 = reference(layer2, x, k_fwd, 2, pad)
    OH2 = (H + 2 * pad - ksize) // 2 + 1
    assert out2.shape == (N, Cout, OH2, OH2)
    assert jnp.allclose(out2, ref2, atol=1e-2, rtol=1e-2), \
        float(jnp.max(jnp.abs(out2 - ref2)))

    print("KERNEL_OK")
</pallas_src>

<mosaic_0001>
module attributes {stable_mosaic.version = 11 : i64} {
  func.func @_sample_kernel(%arg0: i32, %arg1: memref<72x128xf32, #tpu.memory_space<vmem>>, %arg2: memref<72x128xf32, #tpu.memory_space<vmem>>, %arg3: memref<72x128xf32, #tpu.memory_space<vmem>>, %arg4: memref<72x128xbf16, #tpu.memory_space<vmem>>) attributes {dimension_semantics = [#tpu.dimension_semantics<parallel>], iteration_bounds = array<i64: 1>, scalar_prefetch = 0 : i64, scratch_operands = 0 : i64, tpu.core_type = #tpu.core_type<tc>, window_params = [{transform_indices = @transform_0, window_bounds = array<i64: 72, 128>}, {transform_indices = @transform_1, window_bounds = array<i64: 72, 128>}, {transform_indices = @transform_2, window_bounds = array<i64: 72, 128>}, {transform_indices = @transform_3, window_bounds = array<i64: 72, 128>}]} {
    %c0 = arith.constant 0 : index
    %c0_0 = arith.constant 0 : index
    %0 = vector.load %arg1[%c0, %c0_0] : memref<72x128xf32, #tpu.memory_space<vmem>>, vector<72x128xf32>
    %c0_1 = arith.constant 0 : index
    %c0_2 = arith.constant 0 : index
    %1 = vector.load %arg2[%c0_1, %c0_2] : memref<72x128xf32, #tpu.memory_space<vmem>>, vector<72x128xf32>
    %2 = math.exp %1 : vector<72x128xf32>
    %c0_3 = arith.constant 0 : index
    %c0_4 = arith.constant 0 : index
    %3 = vector.load %arg3[%c0_3, %c0_4] : memref<72x128xf32, #tpu.memory_space<vmem>>, vector<72x128xf32>
    %4 = arith.mulf %2, %3 : vector<72x128xf32>
    %5 = arith.addf %0, %4 : vector<72x128xf32>
    %6 = arith.truncf %5 : vector<72x128xf32> to vector<72x128xbf16>
    %c0_5 = arith.constant 0 : index
    %c0_6 = arith.constant 0 : index
    %7 = vector.load %arg4[%c0_5, %c0_6] : memref<72x128xbf16, #tpu.memory_space<vmem>>, vector<72x128xbf16>
    tpu.vector_store %arg4[%c0_5, %c0_6], %6 {strides = array<i32>} : memref<72x128xbf16, #tpu.memory_space<vmem>>, vector<72x128xbf16>,
    return
  }
  func.func @transform_0(%arg0: i32) -> (i32, i32) {
    %c0_i32 = arith.constant 0 : i32
    %c0_i32_0 = arith.constant 0 : i32
    return %arg0, %c0_i32 : i32, i32
  }
  func.func @transform_1(%arg0: i32) -> (i32, i32) {
    %c0_i32 = arith.constant 0 : i32
    %c0_i32_0 = arith.constant 0 : i32
    return %arg0, %c0_i32 : i32, i32
  }
  func.func @transform_2(%arg0: i32) -> (i32, i32) {
    %c0_i32 = arith.constant 0 : i32
    %c0_i32_0 = arith.constant 0 : i32
    return %arg0, %c0_i32 : i32, i32
  }
  func.func @transform_3(%arg0: i32) -> (i32, i32) {
    %c0_i32 = arith.constant 0 : i32
    %c0_i32_0 = arith.constant 0 : i32
    return %arg0, %c0_i32 : i32, i32
  }
}

</mosaic_0001>

<llo_original>
// kernel: tpu_custom_call.1
$region0: #{tpu_custom_call.1}
  #allocation0 [shape = 'u32[]', space=smem, size = 0x4, offset = 0x4, fixed_abs, tag = 'smem constant byte address 0x4 - core index']
  #allocation1 [shape = 'u32[144,128]{1,0:T(1,128)}', space=vmem, size = 0x12000, scoped, tag = 'internal scratch']
  %s0 = inlined_call_operand.hbm [shape: f32[72,128], index: 0, kind: input, shape index: {}]
  %s1 = inlined_call_operand.hbm [shape: f32[72,128], index: 1, kind: input, shape index: {}]
  %s2 = inlined_call_operand.hbm [shape: f32[72,128], index: 2, kind: input, shape index: {}]
  %s3 = inlined_call_operand.hbm [shape: bf16[72,128], index: 3, kind: output, shape index: {}]
  %s4 = sld [smem:[#allocation0]]
  $region34: #{tpu_custom_call.1} parent=0
    _
  %s6 = ssub.s32 1, %s4
  %s7 = scalar_select 0, %s6, %s4
  $region1: #{tpu_custom_call.1} parent=0
    #allocation2 [shape = 'u8[36864]{0}', space=vmem, size = 0x9000, scoped, tag = 'input window, operand 0, single buffered']
    #allocation3 [shape = 's32[1]{0}', space=sflag, size = 0x4, scoped, tag = 'scoped memory for tpu_custom_call.1']
    #allocation4 [shape = 's32[1]{0}', space=sflag, size = 0x4, scoped, tag = 'scoped memory for tpu_custom_call.1']
    #allocation5 [shape = 'u8[36864]{0}', space=vmem, size = 0x9000, scoped, tag = 'input window, operand 1, single buffered']
    #allocation6 [shape = 's32[1]{0}', space=sflag, size = 0x4, scoped, tag = 'scoped memory for tpu_custom_call.1']
    #allocation7 [shape = 'u8[36864]{0}', space=vmem, size = 0x9000, scoped, tag = 'input window, operand 2, single buffered']
    #allocation8 [shape = 'u8[18432]{0}', space=vmem, size = 0x4800, scoped, tag = 'output window, operand 0, single buffered']
    %8 = vsyncpa [#allocation3], 0
    %9 = vsyncpa [#allocation6], 0
    %10 = vsyncpa [#allocation4], 0
    // Predicated region
    $region2: #{tpu_custom_call.1} parent=1 // pred_check
      _
    $region3: #{tpu_custom_call.1} parent=1 // pred_check_branch
      %12 = sbr.rel (0) target = $region5
    $region4: #{tpu_custom_call.1} parent=1 // pred_region
      %s14 = ssub.s32 1152, 1152
      %15 = vsyncadd [#allocation3], %s14
      %s16 = sshll.u32 [#allocation2], 4
      %s17 = int_to_ptr.vmem [resolvable:$true] %s16
      %22 = dma.hbm_to_vmem [thread:$0]  %s0, 1152, %s17, [#allocation3], 128, 128, 8
    $region5: #{tpu_custom_call.1} parent=1 // pred_fallthru
      _
    // Predicated region
    $region6: #{tpu_custom_call.1} parent=1 // pred_check
      _
    $region7: #{tpu_custom_call.1} parent=1 // pred_check_branch
      %24 = sbr.rel (0) target = $region9
    $region8: #{tpu_custom_call.1} parent=1 // pred_region
      %s26 = ssub.s32 1152, 1152
      %27 = vsyncadd [#allocation6], %s26
      %s28 = sshll.u32 [#allocation5], 4
      %s29 = int_to_ptr.vmem [resolvable:$true] %s28
      %34 = dma.hbm_to_vmem [thread:$0]  %s1, 1152, %s29, [#allocation6], 128, 128, 8
    $region9: #{tpu_custom_call.1} parent=1 // pred_fallthru
      _
    // Predicated region
    $region10: #{tpu_custom_call.1} parent=1 // pred_check
      _
    $region11: #{tpu_custom_call.1} parent=1 // pred_check_branch
      %36 = sbr.rel (0) target = $region13
    $region12: #{tpu_custom_call.1} parent=1 // pred_region
      %s38 = ssub.s32 1152, 1152
      %39 = vsyncadd [#allocation6], %s38
      %s40 = sshll.u32 [#allocation7], 4
      %s41 = int_to_ptr.vmem [resolvable:$true] %s40
      %46 = dma.hbm_to_vmem [thread:$0]  %s2, 1152, %s41, [#allocation6], 128, 128, 8
    $region13: #{tpu_custom_call.1} parent=1 // pred_fallthru
      _
    // Predicated region
    $region14: #{tpu_custom_call.1} parent=1 // pred_check
      _
    $region15: #{tpu_custom_call.1} parent=1 // pred_check_branch
      %48 = sbr.rel (0) target = $region17
    $region16: #{tpu_custom_call.1} parent=1 // pred_region
      %49 = dma.done [#allocation3], 1152
    $region17: #{tpu_custom_call.1} parent=1 // pred_fallthru
      _
    // Predicated region
    $region18: #{tpu_custom_call.1} parent=1 // pred_check
      _
    $region19: #{tpu_custom_call.1} parent=1 // pred_check_branch
      %51 = sbr.rel (0) target = $region21
    $region20: #{tpu_custom_call.1} parent=1 // pred_region
      %52 = dma.done [#allocation6], 1152
    $region21: #{tpu_custom_call.1} parent=1 // pred_fallthru
      _
    // Predicated region
    $region22: #{tpu_custom_call.1} parent=1 // pred_check
      _
    $region23: #{tpu_custom_call.1} parent=1 // pred_check_branch
      %54 = sbr.rel (0) target = $region25
    $region24: #{tpu_custom_call.1} parent=1 // pred_region
      %55 = dma.done [#allocation6], 1152
    $region25: #{tpu_custom_call.1} parent=1 // pred_fallthru
      _
    %v56 = vld [vmem:[#allocation2] sm:$0xff]
    %v57 = vld [vmem:[#allocation2 + $0x8] sm:$0xff]
    %v58 = vld [vmem:[#allocation2 + $0x10] sm:$0xff]
    %v59 = vld [vmem:[#allocation2 + $0x18] sm:$0xff]
    %v60 = vld [vmem:[#allocation2 + $0x20] sm:$0xff]
    %v61 = vld [vmem:[#allocation2 + $0x28] sm:$0xff]
    %v62 = vld [vmem:[#allocation2 + $0x30] sm:$0xff]
    %v63 = vld [vmem:[#allocation2 + $0x38] sm:$0xff]
    %v64 = vld [vmem:[#allocation2 + $0x40] sm:$0xff]
    %v65 = vld [vmem:[#allocation5] sm:$0xff]
    %v66 = vld [vmem:[#allocation5 + $0x8] sm:$0xff]
    %v67 = vld [vmem:[#allocation5 + $0x10] sm:$0xff]
    %v68 = vld [vmem:[#allocation5 + $0x18] sm:$0xff]
    %v69 = vld [vmem:[#allocation5 + $0x20] sm:$0xff]
    %v70 = vld [vmem:[#allocation5 + $0x28] sm:$0xff]
    %v71 = vld [vmem:[#allocation5 + $0x30] sm:$0xff]
    %v72 = vld [vmem:[#allocation5 + $0x38] sm:$0xff]
    %v73 = vld [vmem:[#allocation5 + $0x40] sm:$0xff]
    %v74 = vmul.f32 %v65, 1.442695
    %v75 = vpow.pop %v74
    %v76 = vmul.f32 %v66, 1.442695
    %v77 = vpow.pop %v76
    %v78 = vmul.f32 %v67, 1.442695
    %v79 = vpow.pop %v78
    %v80 = vmul.f32 %v68, 1.442695
    %v81 = vpow.pop %v80
    %v82 = vmul.f32 %v69, 1.442695
    %v83 = vpow.pop %v82
    %v84 = vmul.f32 %v70, 1.442695
    %v85 = vpow.pop %v84
    %v86 = vmul.f32 %v71, 1.442695
    %v87 = vpow.pop %v86
    %v88 = vmul.f32 %v72, 1.442695
    %v89 = vpow.pop %v88
    %v90 = vmul.f32 %v73, 1.442695
    %v91 = vpow.pop %v90
    %v92 = vld [vmem:[#allocation7] sm:$0xff]
    %v93 = vld [vmem:[#allocation7 + $0x8] sm:$0xff]
    %v94 = vld [vmem:[#allocation7 + $0x10] sm:$0xff]
    %v95 = vld [vmem:[#allocation7 + $0x18] sm:$0xff]
    %v96 = vld [vmem:[#allocation7 + $0x20] sm:$0xff]
    %v97 = vld [vmem:[#allocation7 + $0x28] sm:$0xff]
    %v98 = vld [vmem:[#allocation7 + $0x30] sm:$0xff]
    %v99 = vld [vmem:[#allocation7 + $0x38] sm:$0xff]
    %v100 = vld [vmem:[#allocation7 + $0x40] sm:$0xff]
    %v101 = vmul.f32 %v75, %v92
    %v102 = vmul.f32 %v77, %v93
    %v103 = vmul.f32 %v79, %v94
    %v104 = vmul.f32 %v81, %v95
    %v105 = vmul.f32 %v83, %v96
    %v106 = vmul.f32 %v85, %v97
    %v107 = vmul.f32 %v87, %v98
    %v108 = vmul.f32 %v89, %v99
    %v109 = vmul.f32 %v91, %v100
    %v110 = vadd.f32 %v56, %v101
    %v111 = vadd.f32 %v57, %v102
    %v112 = vadd.f32 %v58, %v103
    %v113 = vadd.f32 %v59, %v104
    %v114 = vadd.f32 %v60, %v105
    %v115 = vadd.f32 %v61, %v106
    %v116 = vadd.f32 %v62, %v107
    %v117 = vadd.f32 %v63, %v108
    %v118 = vadd.f32 %v64, %v109
    %v119 = vpack.c.bf16 %v111, %v110
    %v120 = vpack.c.bf16 %v113, %v112
    %v121 = vpack.c.bf16 %v115, %v114
    %v122 = vpack.c.bf16 %v117, %v116
    %v123 = vpack.c.bf16 %v118, %v118
    %v129 = vunpack.c.l.b16 %v119
    %v130 = vunpack.c.h.b16 %v119
    %v131 = vunpack.c.l.b16 %v120
    %v132 = vunpack.c.h.b16 %v120
    %v133 = vunpack.c.l.b16 %v121
    %v134 = vunpack.c.h.b16 %v121
    %v135 = vunpack.c.l.b16 %v122
    %v136 = vunpack.c.h.b16 %v122
    %v137 = vunpack.c.l.b16 %v123
    %v138 = vpack.c.b16 %v129, %v129
    %v139 = vpack.c.b16 %v130, %v130
    %v140 = vpack.c.b16 %v131, %v131
    %v141 = vpack.c.b16 %v132, %v132
    %v142 = vpack.c.b16 %v133, %v133
    %v143 = vpack.c.b16 %v134, %v134
    %v144 = vpack.c.b16 %v135, %v135
    %v145 = vpack.c.b16 %v136, %v136
    %v146 = vpack.c.b16 %v137, %v137
    %156 = vst [vmem:[#allocation8] sm:$0xf] %v138
    %157 = vst [vmem:[#allocation8 + $0x4] sm:$0xf] %v139
    %158 = vst [vmem:[#allocation8 + $0x8] sm:$0xf] %v140
    %159 = vst [vmem:[#allocation8 + $0xc] sm:$0xf] %v141
    %160 = vst [vmem:[#allocation8 + $0x10] sm:$0xf] %v142
    %161 = vst [vmem:[#allocation8 + $0x14] sm:$0xf] %v143
    %162 = vst [vmem:[#allocation8 + $0x18] sm:$0xf] %v144
    %163 = vst [vmem:[#allocation8 + $0x1c] sm:$0xf] %v145
    %164 = vst [vmem:[#allocation8 + $0x20] sm:$0xf] %v146
    // Predicated region
    $region26: #{tpu_custom_call.1} parent=1 // pred_check
      _
    $region27: #{tpu_custom_call.1} parent=1 // pred_check_branch
      %166 = sbr.rel (0) target = $region29
    $region28: #{tpu_custom_call.1} parent=1 // pred_region
      %s168 = ssub.s32 576, 576
      %169 = vsyncadd [#allocation4], %s168
      %s170 = sshll.u32 [#allocation8], 4
      %s171 = int_to_ptr.vmem [resolvable:$true] %s170
      %176 = dma.vmem_to_hbm [thread:$0]  %s171, 576, %s3, [#allocation4], 64, 64, 4
    $region29: #{tpu_custom_call.1} parent=1 // pred_fallthru
      _
    // Predicated region
    $region30: #{tpu_custom_call.1} parent=1 // pred_check
      _
    $region31: #{tpu_custom_call.1} parent=1 // pred_check_branch
      %178 = sbr.rel (0) target = $region33
    $region32: #{tpu_custom_call.1} parent=1 // pred_region
      %179 = dma.done [#allocation4], 576
    $region33: #{tpu_custom_call.1} parent=1 // pred_fallthru
      _
    %180 = vsyncpa [#allocation3], 1
    %181 = vsyncpa [#allocation6], 1
    %182 = vsyncpa [#allocation4], 1

</llo_original>
